<compile_context>
chip_gen: v5e
topology: v5e:2x2
jax: 0.10.0
libtpu: 0.0.40
codegen_flags: <defaults>
</compile_context>

<pallas_src>
import functools
import math

import jax
import jax.numpy as jnp
import numpy as np
from jax.experimental import pallas as pl
from jax.experimental.pallas import tpu as pltpu


# -----------------------------------------------------------------------------
# Kernels
# -----------------------------------------------------------------------------
def _pe_kernel(rep_ref, scale_ref, phase_ref, x_ref, out_ref, *, precision):
    """sin-only positional encoding (y is None); grouped lane-dense layout."""
    # 0/1 replication on the otherwise-idle MXU: lane r*2LD + h*LD + l*D + d of
    # each grouped row receives x[., r*D + d] (exact: weights are 0/1).
    x_rep = jnp.dot(x_ref[...], rep_ref[...], precision=precision,
                    preferred_element_type=jnp.float32)
    # Power-of-two frequency scaling + pi/2 phase on the "cos" half (VPU, exact).
    x_enc = x_rep * scale_ref[...] + phase_ref[...]
    out_ref[...] = jnp.sin(x_enc).astype(out_ref.dtype)


def _pe_var_kernel(rep_ref, scale_ref, scale2_ref, phase_ref,
                   x_ref, y_ref, xret_ref, yret_ref, *, precision):
    """IPE-style encoding with variance y -> (mean, variance)."""
    rep = rep_ref[...]
    x_enc = (jnp.dot(x_ref[...], rep, precision=precision,
                     preferred_element_type=jnp.float32) * scale_ref[...]
             + phase_ref[...])
    y_enc = (jnp.dot(y_ref[...], rep, precision=precision,
                     preferred_element_type=jnp.float32) * scale2_ref[...])
    sv = jnp.sin(x_enc)                # first half sin(xs), second half cos(xs)
    ev = jnp.exp(-0.5 * y_enc)
    x_ret = ev * sv
    e2 = ev * ev
    e4 = e2 * e2                       # exp(-2*y_enc) without a second exp
    cos2 = 1.0 - 2.0 * sv * sv         # cos(2*x_enc)
    y_ret = jnp.maximum(0.0, 0.5 * (1.0 - e4 * cos2) - x_ret * x_ret)
    xret_ref[...] = x_ret.astype(xret_ref.dtype)
    yret_ref[...] = y_ret.astype(yret_ref.dtype)


# -----------------------------------------------------------------------------
# Wrapper (PositionalEncoding "module")
# -----------------------------------------------------------------------------
def _default_block_out_bytes():
    """Per-output VMEM budget per grid step (Pallas double-buffers everything)."""
    try:
        kind = jax.devices()[0].device_kind.lower()
    except Exception:  # pragma: no cover
        kind = ""
    # v5e: 16 MiB default scoped VMEM -> ~2 MiB/output (var path: 2 outs + 2
    # ins, all double-buffered).  v6e/v7x: 32 MiB default scoped -> ~4 MiB
    # (v7x has only 64 MiB physical per TC; don't raise much further without
    # also setting vmem_limit_bytes).
    if "v5 lite" in kind or "v5e" in kind or "v5litepod" in kind:
        return 2 * 1024 * 1024
    return 4 * 1024 * 1024


class PositionalEncoding:
    def __init__(self, min_deg, max_deg, out_dtype=jnp.float32,
                 block_out_bytes=None,
                 dot_precision=jax.lax.Precision.HIGHEST):
        self.min_deg = min_deg
        self.max_deg = max_deg
        self.num_freqs = max_deg - min_deg
        # Deterministic "parameter" matching torch: [2**i for i in range(min_deg, max_deg)]
        self._scales_np = np.asarray(
            [2.0 ** i for i in range(min_deg, max_deg)], dtype=np.float32)
        self.scales = jnp.asarray(self._scales_np)
        # f32 default matches the torch module; pass bfloat16 when the
        # downstream MLP is bf16 (outputs dominate HBM traffic).
        self.out_dtype = out_dtype
        self.block_out_bytes = (block_out_bytes if block_out_bytes is not None
                                else _default_block_out_bytes())
        # HIGHEST = 6-pass bf16 (known-good; HBM-bound after the g fix).
        # HIGH = 3-pass bf16, still ~f32-accurate here (rep is 0/1, scaling on
        # the VPU) and halves MXU time — preferred on v5e with bf16 outputs.
        self.dot_precision = dot_precision
        self._tables = {}                       # cached per input feature dim D

    # --- compile-time constant tables (keyed by D) ----------------------------
    def _get_tables(self, D):
        if D in self._tables:
            return self._tables[D]
        L = self.num_freqs
        LD = L * D
        out_dim = 2 * LD
        # Smallest group size with g*out_dim a multiple of 128 lanes
        # (perf fix: derive from out_dim, not LD).
        g = 128 // math.gcd(out_dim, 128)
        gD, gOUT = g * D, g * out_dim
        s = self._scales_np
        rep = np.zeros((gD, gOUT), np.float32)    # 0/1 replication, shared x/y
        scale = np.zeros((1, gOUT), np.float32)   # 2**l per output lane
        phase = np.zeros((1, gOUT), np.float32)   # +pi/2 on the "cos" half
        for r in range(g):
            base = r * out_dim
            for l in range(L):
                for d in range(D):
                    src = r * D + d
                    k = l * D + d
                    rep[src, base + k] = 1.0
                    rep[src, base + LD + k] = 1.0
                    scale[0, base + k] = s[l]
                    scale[0, base + LD + k] = s[l]
            phase[0, base + LD: base + out_dim] = 0.5 * np.pi
        tabs = (g, jnp.asarray(rep), jnp.asarray(scale),
                jnp.asarray(scale * scale), jnp.asarray(phase))
        self._tables[D] = tabs
        return tabs

    def __call__(self, x, y=None):
        orig_lead = x.shape[:-1]
        D = x.shape[-1]
        out_dim = 2 * self.num_freqs * D
        g, rep, scale, scale2, phase = self._get_tables(D)
        gD, gOUT = g * D, g * out_dim

        x2 = x.reshape(-1, D).astype(jnp.float32)
        N = x2.shape[0]

        # Pad rows only to a multiple of g (needed for the free row-major
        # regroup reshape); the ragged last block is handled by the cdiv grid.
        n_g = -(-N // g)
        N_pad = n_g * g
        if N_pad != N:
            x2 = jnp.pad(x2, ((0, N_pad - N), (0, 0)))
        xg = x2.reshape(n_g, gD)

        # Tile sizing: ~block_out_bytes of *each* output per grid step.
        out_itemsize = jnp.dtype(self.out_dtype).itemsize
        tn_budget = max(8, (self.block_out_bytes // (gOUT * out_itemsize)) // 8 * 8)
        tn_g = min(tn_budget, ((n_g + 7) // 8) * 8)    # never over-tile tiny N
        grid = (pl.cdiv(n_g, tn_g),)

        # Constant-index table blocks: Pallas skips the re-DMA when the block
        # index is unchanged, so double-buffering them only costs ~2x their
        # (now small) footprint.
        # TODO(synk): switch tab_spec to pipeline_mode=pl.Buffered(1) once the
        # single-buffer + constant-index combination is confirmed on all gens.
        def tab_spec(a):
            return pl.BlockSpec(a.shape, lambda i: (0, 0))

        in_spec = pl.BlockSpec((tn_g, gD), lambda i: (i, 0))
        out_spec = pl.BlockSpec((tn_g, gOUT), lambda i: (i, 0))
        # "parallel" row axis -> megacore / v7x 2-TC sharding.
        cparams = pltpu.CompilerParams(dimension_semantics=("parallel",))

        if y is None:
            out = pl.pallas_call(
                functools.partial(_pe_kernel, precision=self.dot_precision),
                out_shape=jax.ShapeDtypeStruct((n_g, gOUT), self.out_dtype),
                grid=grid,
                in_specs=[tab_spec(rep), tab_spec(scale), tab_spec(phase),
                          in_spec],
                out_specs=out_spec,
                compiler_params=cparams,
            )(rep, scale, phase, xg)
            out = out.reshape(N_pad, out_dim)
            if N_pad != N:
                # TODO(synk): verify with xprof that this slice does not
                # materialize a second full HBM copy of the dominant output;
                # if it does, carry the padded row count through the consumer.
                out = out[:N]
            return out.reshape(*orig_lead, out_dim)

        y2 = y.reshape(-1, D).astype(jnp.float32)
        if N_pad != N:
            y2 = jnp.pad(y2, ((0, N_pad - N), (0, 0)))
        yg = y2.reshape(n_g, gD)

        x_ret, y_ret = pl.pallas_call(
            functools.partial(_pe_var_kernel, precision=self.dot_precision),
            out_shape=(jax.ShapeDtypeStruct((n_g, gOUT), self.out_dtype),
                       jax.ShapeDtypeStruct((n_g, gOUT), self.out_dtype)),
            grid=grid,
            in_specs=[tab_spec(rep), tab_spec(scale), tab_spec(scale2),
                      tab_spec(phase), in_spec, in_spec],
            out_specs=(out_spec, out_spec),
            compiler_params=cparams,
        )(rep, scale, scale2, phase, xg, yg)

        x_ret = x_ret.reshape(N_pad, out_dim)
        y_ret = y_ret.reshape(N_pad, out_dim)
        if N_pad != N:
            x_ret = x_ret[:N]
            y_ret = y_ret[:N]
        return (x_ret.reshape(*orig_lead, out_dim),
                y_ret.reshape(*orig_lead, out_dim))


# -----------------------------------------------------------------------------
# Pure-JAX reference (mirrors the PyTorch forward exactly)
# -----------------------------------------------------------------------------
def _ref_forward(scales, x, y=None):
    shape = list(x.shape[:-1]) + [-1]
    x_enc = (x[..., None, :] * scales[:, None]).reshape(shape)
    x_enc = jnp.concatenate([x_enc, x_enc + 0.5 * jnp.pi], -1)
    if y is not None:
        y_enc = (y[..., None, :] * scales[:, None] ** 2).reshape(shape)
        y_enc = jnp.concatenate([y_enc, y_enc], -1)
        x_ret = jnp.exp(-0.5 * y_enc) * jnp.sin(x_enc)
        y_ret = jnp.maximum(
            jnp.zeros_like(y_enc),
            0.5 * (1 - jnp.exp(-2 * y_enc) * jnp.cos(2 * x_enc)) - x_ret ** 2,
        )
        return x_ret, y_ret
    return jnp.sin(x_enc)


# -----------------------------------------------------------------------------
# Main
# -----------------------------------------------------------------------------
if __name__ == "__main__":
    key = jax.random.PRNGKey(0)
    k1, k2 = jax.random.split(key)

    # 2 rays x 50 samples, 3-D coords, degrees 0..3 (L=4).  N=100 rows is NOT a
    # multiple of the group/tile -> exercises the g-padding + ragged-grid path.
    B, S, D = 2, 50, 3
    min_deg, max_deg = 0, 4
    x = jax.random.normal(k1, (B, S, D), dtype=jnp.float32)
    y = jnp.abs(jax.random.normal(k2, (B, S, D), dtype=jnp.float32)) * 0.1

    pe = PositionalEncoding(min_deg, max_deg)

    # Case 1: y is None -> sin encoding.
    out = jax.block_until_ready(pe(x))
    ref = _ref_forward(pe.scales, x)
    np.testing.assert_allclose(np.asarray(out), np.asarray(ref),
                               rtol=1e-4, atol=1e-5)

    # Case 2: with variance y -> (mean, variance) encoding.
    x_ret, y_ret = pe(x, y)
    x_ret = jax.block_until_ready(x_ret)
    y_ret = jax.block_until_ready(y_ret)
    x_ref, y_ref = _ref_forward(pe.scales, x, y)
    np.testing.assert_allclose(np.asarray(x_ret), np.asarray(x_ref),
                               rtol=1e-4, atol=1e-5)
    np.testing.assert_allclose(np.asarray(y_ret), np.asarray(y_ref),
                               rtol=1e-4, atol=1e-5)

    # Case 3: bf16 outputs (recommended when the downstream MLP is bf16).
    # sin outputs live in [-1, 1] so an absolute bf16-level tolerance suffices.
    pe_bf16 = PositionalEncoding(min_deg, max_deg, out_dtype=jnp.bfloat16)
    out_bf16 = jax.block_until_ready(pe_bf16(x))
    np.testing.assert_allclose(np.asarray(out_bf16.astype(jnp.float32)),
                               np.asarray(ref), rtol=0.0, atol=2e-2)

    print("KERNEL_OK")
</pallas_src>

<mosaic_0001>
module attributes {stable_mosaic.version = 11 : i64} {
  func.func @_pe_kernel(%arg0: i32, %arg1: memref<48x384xf32, #tpu.memory_space<vmem>>, %arg2: memref<1x384xf32, #tpu.memory_space<vmem>>, %arg3: memref<1x384xf32, #tpu.memory_space<vmem>>, %arg4: memref<8x48xf32, #tpu.memory_space<vmem>>, %arg5: memref<8x384xf32, #tpu.memory_space<vmem>>) attributes {dimension_semantics = [#tpu.dimension_semantics<parallel>], iteration_bounds = array<i64: 1>, scalar_prefetch = 0 : i64, scratch_operands = 0 : i64, tpu.core_type = #tpu.core_type<tc>, window_params = [{pipeline_mode = #tpu.pipeline_mode<synchronous>, transform_indices = @transform_0, window_bounds = array<i64: 48, 384>}, {pipeline_mode = #tpu.pipeline_mode<synchronous>, transform_indices = @transform_1, window_bounds = array<i64: 1, 384>}, {pipeline_mode = #tpu.pipeline_mode<synchronous>, transform_indices = @transform_2, window_bounds = array<i64: 1, 384>}, {transform_indices = @transform_3, window_bounds = array<i64: 8, 48>}, {transform_indices = @transform_4, window_bounds = array<i64: 8, 384>}]} {
    %c0 = arith.constant 0 : index
    %c0_0 = arith.constant 0 : index
    %0 = vector.load %arg4[%c0, %c0_0] : memref<8x48xf32, #tpu.memory_space<vmem>>, vector<8x48xf32>
    %c0_1 = arith.constant 0 : index
    %c0_2 = arith.constant 0 : index
    %1 = vector.load %arg1[%c0_1, %c0_2] : memref<48x384xf32, #tpu.memory_space<vmem>>, vector<48x384xf32>
    %cst = arith.constant dense<0.000000e+00> : vector<8x384xf32>
    %2 = tpu.matmul %0, %1, %cst {dimension_numbers = #tpu.dot_dimension_numbers<[1], [0], [0], [1], [0, 0, 1, 1], [], []>, precision = #tpu.contract_precision<fp32>} : vector<8x48xf32>, vector<48x384xf32>, vector<8x384xf32> -> vector<8x384xf32>
    %c0_3 = arith.constant 0 : index
    %c0_4 = arith.constant 0 : index
    %3 = vector.load %arg2[%c0_3, %c0_4] : memref<1x384xf32, #tpu.memory_space<vmem>>, vector<1x384xf32>
    %4 = vector.broadcast %3 : vector<1x384xf32> to vector<8x384xf32>
    %5 = arith.mulf %2, %4 : vector<8x384xf32>
    %c0_5 = arith.constant 0 : index
    %c0_6 = arith.constant 0 : index
    %6 = vector.load %arg3[%c0_5, %c0_6] : memref<1x384xf32, #tpu.memory_space<vmem>>, vector<1x384xf32>
    %7 = vector.broadcast %6 : vector<1x384xf32> to vector<8x384xf32>
    %8 = arith.addf %5, %7 : vector<8x384xf32>
    %9 = math.sin %8 : vector<8x384xf32>
    %c0_7 = arith.constant 0 : index
    %c0_8 = arith.constant 0 : index
    %10 = vector.load %arg5[%c0_7, %c0_8] : memref<8x384xf32, #tpu.memory_space<vmem>>, vector<8x384xf32>
    tpu.vector_store %arg5[%c0_7, %c0_8], %9 {strides = array<i32>} : memref<8x384xf32, #tpu.memory_space<vmem>>, vector<8x384xf32>,
    return
  }
  func.func @transform_0(%arg0: i32) -> (i32, i32) {
    %c0_i32 = arith.constant 0 : i32
    %c0_i32_0 = arith.constant 0 : i32
    %c0_i32_1 = arith.constant 0 : i32
    return %c0_i32, %c0_i32_0 : i32, i32
  }
  func.func @transform_1(%arg0: i32) -> (i32, i32) {
    %c0_i32 = arith.constant 0 : i32
    %c0_i32_0 = arith.constant 0 : i32
    %c0_i32_1 = arith.constant 0 : i32
    return %c0_i32, %c0_i32_0 : i32, i32
  }
  func.func @transform_2(%arg0: i32) -> (i32, i32) {
    %c0_i32 = arith.constant 0 : i32
    %c0_i32_0 = arith.constant 0 : i32
    %c0_i32_1 = arith.constant 0 : i32
    return %c0_i32, %c0_i32_0 : i32, i32
  }
  func.func @transform_3(%arg0: i32) -> (i32, i32) {
    %c0_i32 = arith.constant 0 : i32
    %c0_i32_0 = arith.constant 0 : i32
    return %arg0, %c0_i32 : i32, i32
  }
  func.func @transform_4(%arg0: i32) -> (i32, i32) {
    %c0_i32 = arith.constant 0 : i32
    %c0_i32_0 = arith.constant 0 : i32
    return %arg0, %c0_i32 : i32, i32
  }
}

</mosaic_0001>

<llo_original>
// kernel: tpu_custom_call.1
$region0: #{tpu_custom_call.1}
  #allocation0 [shape = 'u32[]', space=smem, size = 0x4, offset = 0x4, fixed_abs, tag = 'smem constant byte address 0x4 - core index']
  #allocation1 [shape = 'u32[72,128]{1,0:T(1,128)}', space=vmem, size = 0x9000, scoped, tag = 'internal scratch']
  %s0 = inlined_call_operand.hbm [shape: f32[48,384], index: 0, kind: input, shape index: {}]
  %s1 = inlined_call_operand.hbm [shape: f32[1,384], index: 1, kind: input, shape index: {}]
  %s2 = inlined_call_operand.hbm [shape: f32[1,384], index: 2, kind: input, shape index: {}]
  %s3 = inlined_call_operand.hbm [shape: f32[7,48], index: 3, kind: input, shape index: {}]
  %s4 = inlined_call_operand.hbm [shape: f32[7,384], index: 4, kind: output, shape index: {}]
  %s5 = sld [smem:[#allocation0]]
  $region42: #{tpu_custom_call.1} parent=0
    _
  %s7 = ssub.s32 1, %s5
  %s8 = scalar_select 0, %s7, %s5
  $region1: #{tpu_custom_call.1} parent=0
    #allocation2 [shape = 'u8[73728]{0}', space=vmem, size = 0x12000, scoped, tag = 'input window, operand 0, single buffered']
    #allocation3 [shape = 's32[1]{0}', space=sflag, size = 0x4, scoped, tag = 'scoped memory for tpu_custom_call.1']
    #allocation4 [shape = 's32[1]{0}', space=sflag, size = 0x4, scoped, tag = 'scoped memory for tpu_custom_call.1']
    #allocation5 [shape = 'u8[1536]{0}', space=vmem, size = 0x800, scoped, tag = 'input window, operand 1, single buffered']
    #allocation6 [shape = 's32[1]{0}', space=sflag, size = 0x4, scoped, tag = 'scoped memory for tpu_custom_call.1']
    #allocation7 [shape = 'u8[1536]{0}', space=vmem, size = 0x800, scoped, tag = 'input window, operand 2, single buffered']
    #allocation8 [shape = 'u8[4096]{0}', space=vmem, size = 0x1000, scoped, tag = 'input window, operand 3, single buffered']
    #allocation9 [shape = 's32[1]{0}', space=sflag, size = 0x4, scoped, tag = 'scoped memory for tpu_custom_call.1']
    #allocation10 [shape = 'u8[12288]{0}', space=vmem, size = 0x3000, scoped, tag = 'output window, operand 0, single buffered']
    %9 = vsyncpa [#allocation3], 0
    %10 = vsyncpa [#allocation6], 0
    %11 = vsyncpa [#allocation9], 0
    %12 = vsyncpa [#allocation4], 0
    // Predicated region
    $region2: #{tpu_custom_call.1} parent=1 // pred_check
      _
    $region3: #{tpu_custom_call.1} parent=1 // pred_check_branch
      %14 = sbr.rel (0) target = $region5
    $region4: #{tpu_custom_call.1} parent=1 // pred_region
      %16 = vsyncadd [#allocation3], 0
      %s17 = sshll.u32 %s0, 4
      %s18 = int_to_ptr.hbm [resolvable:$true] %s17
      %s19 = sshll.u32 [#allocation2], 4
      %s20 = int_to_ptr.vmem [resolvable:$true] %s19
      %25 = dma.hbm_to_vmem [thread:$0]  %s18, 2304, %s20, [#allocation3], 384, 384, 24
    $region5: #{tpu_custom_call.1} parent=1 // pred_fallthru
      _
    // Predicated region
    $region6: #{tpu_custom_call.1} parent=1 // pred_check
      _
    $region7: #{tpu_custom_call.1} parent=1 // pred_check_branch
      %27 = sbr.rel (0) target = $region9
    $region8: #{tpu_custom_call.1} parent=1 // pred_region
      %29 = vsyncadd [#allocation6], 0
      %s31 = sshll.u32 %s1, 4
      %s32 = int_to_ptr.hbm [resolvable:$true] %s31
      %s33 = sshll.u32 [#allocation5], 4
      %s34 = int_to_ptr.vmem [resolvable:$true] %s33
      %36 = dma.hbm_to_vmem [thread:$0]  %s32, 48, %s34, [#allocation6]
    $region9: #{tpu_custom_call.1} parent=1 // pred_fallthru
      _
    // Predicated region
    $region10: #{tpu_custom_call.1} parent=1 // pred_check
      _
    $region11: #{tpu_custom_call.1} parent=1 // pred_check_branch
      %38 = sbr.rel (0) target = $region13
    $region12: #{tpu_custom_call.1} parent=1 // pred_region
      %40 = vsyncadd [#allocation6], 0
      %s42 = sshll.u32 %s2, 4
      %s43 = int_to_ptr.hbm [resolvable:$true] %s42
      %s44 = sshll.u32 [#allocation7], 4
      %s45 = int_to_ptr.vmem [resolvable:$true] %s44
      %47 = dma.hbm_to_vmem [thread:$0]  %s43, 48, %s45, [#allocation6]
    $region13: #{tpu_custom_call.1} parent=1 // pred_fallthru
      _
    // Predicated region
    $region14: #{tpu_custom_call.1} parent=1 // pred_check
      _
    $region15: #{tpu_custom_call.1} parent=1 // pred_check_branch
      %49 = sbr.rel (0) target = $region17
    $region16: #{tpu_custom_call.1} parent=1 // pred_region
      %51 = vsyncadd [#allocation9], 0
      %s53 = sshll.u32 %s3, 4
      %s54 = int_to_ptr.hbm [resolvable:$true] %s53
      %s55 = sshll.u32 [#allocation8], 4
      %s56 = int_to_ptr.vmem [resolvable:$true] %s55
      %58 = dma.hbm_to_vmem [thread:$0]  %s54, 128, %s56, [#allocation9]
    $region17: #{tpu_custom_call.1} parent=1 // pred_fallthru
      _
    // Predicated region
    $region18: #{tpu_custom_call.1} parent=1 // pred_check
      _
    $region19: #{tpu_custom_call.1} parent=1 // pred_check_branch
      %60 = sbr.rel (0) target = $region21
    $region20: #{tpu_custom_call.1} parent=1 // pred_region
      %62 = dma.done [#allocation3], 2304
    $region21: #{tpu_custom_call.1} parent=1 // pred_fallthru
      _
    // Predicated region
    $region22: #{tpu_custom_call.1} parent=1 // pred_check
      _
    $region23: #{tpu_custom_call.1} parent=1 // pred_check_branch
      %64 = sbr.rel (0) target = $region25
    $region24: #{tpu_custom_call.1} parent=1 // pred_region
      %66 = dma.done [#allocation6], 48
    $region25: #{tpu_custom_call.1} parent=1 // pred_fallthru
      _
    // Predicated region
    $region26: #{tpu_custom_call.1} parent=1 // pred_check
      _
    $region27: #{tpu_custom_call.1} parent=1 // pred_check_branch
      %68 = sbr.rel (0) target = $region29
    $region28: #{tpu_custom_call.1} parent=1 // pred_region
      %70 = dma.done [#allocation6], 48
    $region29: #{tpu_custom_call.1} parent=1 // pred_fallthru
      _
    // Predicated region
    $region30: #{tpu_custom_call.1} parent=1 // pred_check
      _
    $region31: #{tpu_custom_call.1} parent=1 // pred_check_branch
      %72 = sbr.rel (0) target = $region33
    $region32: #{tpu_custom_call.1} parent=1 // pred_region
      %74 = dma.done [#allocation9], 128
    $region33: #{tpu_custom_call.1} parent=1 // pred_fallthru
      _
    %v75 = vld [vmem:[#allocation8] sm:$0xff]
    %v76 = vld [vmem:[#allocation2] sm:$0xff]
    %v77 = vld [vmem:[#allocation2 + $0x8] sm:$0xff]
    %v78 = vld [vmem:[#allocation2 + $0x10] sm:$0xff]
    %v79 = vld [vmem:[#allocation2 + $0x18] sm:$0xff]
    %v80 = vld [vmem:[#allocation2 + $0x20] sm:$0xff]
    %v81 = vld [vmem:[#allocation2 + $0x28] sm:$0xff]
    %v82 = vld [vmem:[#allocation2 + $0x30] sm:$0xff]
    %v83 = vld [vmem:[#allocation2 + $0x38] sm:$0xff]
    %v84 = vld [vmem:[#allocation2 + $0x40] sm:$0xff]
    %v85 = vld [vmem:[#allocation2 + $0x48] sm:$0xff]
    %v86 = vld [vmem:[#allocation2 + $0x50] sm:$0xff]
    %v87 = vld [vmem:[#allocation2 + $0x58] sm:$0xff]
    %v88 = vld [vmem:[#allocation2 + $0x60] sm:$0xff]
    %v89 = vld [vmem:[#allocation2 + $0x68] sm:$0xff]
    %v90 = vld [vmem:[#allocation2 + $0x70] sm:$0xff]
    %v91 = vld [vmem:[#allocation2 + $0x78] sm:$0xff]
    %v92 = vld [vmem:[#allocation2 + $0x80] sm:$0xff]
    %v93 = vld [vmem:[#allocation2 + $0x88] sm:$0xff]
    %vm94 = vcmask 392192
    %v96 = vsel %vm94, %v75, 0
    %98 = vmatpush.msra.mxu0 0.0
    %99 = vmatpush.msra.mxu0 0.0
    %100 = vmatpush.msra.mxu0 0.0
    %101 = vmatpush.msra.mxu0 0.0
    %102 = vmatpush.msra.mxu0 0.0
    %103 = vmatpush.msra.mxu0 0.0
    %104 = vmatpush.msra.mxu0 0.0
    %105 = vmatpush.msra.mxu0 0.0
    %106 = vmatpush.msra.mxu0 0.0
    %107 = vmatpush.msra.mxu0 0.0
    %v108 = vand.u32 %v91, 4294901760
    %109 = vmatpush.msra.mxu0 %v108
    %v110 = vand.u32 %v88, 4294901760
    %111 = vmatpush.msra.mxu0 %v110
    %v112 = vand.u32 %v85, 4294901760
    %113 = vmatpush.msra.mxu0 %v112
    %v114 = vand.u32 %v82, 4294901760
    %115 = vmatpush.msra.mxu0 %v114
    %v116 = vand.u32 %v79, 4294901760
    %117 = vmatpush.msra.mxu0 %v116
    %v118 = vand.u32 %v76, 4294901760
    %119 = vmatpush.msra.mxu0 %v118
    %v120 = vand.u32 %v96, 4294901760
    %v121 = vsub.f32 %v96, %v120
    %v122 = vand.u32 %v121, 4294901760
    %v123 = vsub.f32 %v121, %v122
    %v124 = vand.u32 %v123, 4294901760
    %125 = vmatmul.f32.gmra.mxu0 %v124
    %v126 = vpop.f32.mrf.mxu0
    %v127 = vadd.f32 0.0, %v126
    %128 = vdwg.mxu0
    %129 = vmatpush.msra.mxu0 0.0
    %130 = vmatpush.msra.mxu0 0.0
    %131 = vmatpush.msra.mxu0 0.0
    %132 = vmatpush.msra.mxu0 0.0
    %133 = vmatpush.msra.mxu0 0.0
    %134 = vmatpush.msra.mxu0 0.0
    %135 = vmatpush.msra.mxu0 0.0
    %136 = vmatpush.msra.mxu0 0.0
    %137 = vmatpush.msra.mxu0 0.0
    %138 = vmatpush.msra.mxu0 0.0
    %v139 = vand.u32 %v91, 4294901760
    %v140 = vsub.f32 %v91, %v139
    %v141 = vand.u32 %v140, 4294901760
    %v142 = vsub.f32 %v140, %v141
    %v143 = vand.u32 %v142, 4294901760
    %144 = vmatpush.msra.mxu0 %v143
    %v145 = vand.u32 %v88, 4294901760
    %v146 = vsub.f32 %v88, %v145
    %v147 = vand.u32 %v146, 4294901760
    %v148 = vsub.f32 %v146, %v147
    %v149 = vand.u32 %v148, 4294901760
    %150 = vmatpush.msra.mxu0 %v149
    %v151 = vand.u32 %v85, 4294901760
    %v152 = vsub.f32 %v85, %v151
    %v153 = vand.u32 %v152, 4294901760
    %v154 = vsub.f32 %v152, %v153
    %v155 = vand.u32 %v154, 4294901760
    %156 = vmatpush.msra.mxu0 %v155
    %v157 = vand.u32 %v82, 4294901760
    %v158 = vsub.f32 %v82, %v157
    %v159 = vand.u32 %v158, 4294901760
    %v160 = vsub.f32 %v158, %v159
    %v161 = vand.u32 %v160, 4294901760
    %162 = vmatpush.msra.mxu0 %v161
    %v163 = vand.u32 %v79, 4294901760
    %v164 = vsub.f32 %v79, %v163
    %v165 = vand.u32 %v164, 4294901760
    %v166 = vsub.f32 %v164, %v165
    %v167 = vand.u32 %v166, 4294901760
    %168 = vmatpush.msra.mxu0 %v167
    %v169 = vand.u32 %v76, 4294901760
    %v170 = vsub.f32 %v76, %v169
    %v171 = vand.u32 %v170, 4294901760
    %v172 = vsub.f32 %v170, %v171
    %v173 = vand.u32 %v172, 4294901760
    %174 = vmatpush.msra.mxu0 %v173
    %v175 = vand.u32 %v96, 4294901760
    %176 = vmatmul.f32.gmra.mxu0 %v175
    %v177 = vpop.f32.mrf.mxu0
    %v178 = vadd.f32 %v127, %v177
    %179 = vdwg.mxu0
    %180 = vmatpush.msra.mxu0 0.0
    %181 = vmatpush.msra.mxu0 0.0
    %182 = vmatpush.msra.mxu0 0.0
    %183 = vmatpush.msra.mxu0 0.0
    %184 = vmatpush.msra.mxu0 0.0
    %185 = vmatpush.msra.mxu0 0.0
    %186 = vmatpush.msra.mxu0 0.0
    %187 = vmatpush.msra.mxu0 0.0
    %188 = vmatpush.msra.mxu0 0.0
    %189 = vmatpush.msra.mxu0 0.0
    %v190 = vand.u32 %v91, 4294901760
    %v191 = vsub.f32 %v91, %v190
    %192 = vmatpush.msra.mxu0 %v191
    %v193 = vand.u32 %v88, 4294901760
    %v194 = vsub.f32 %v88, %v193
    %195 = vmatpush.msra.mxu0 %v194
    %v196 = vand.u32 %v85, 4294901760
    %v197 = vsub.f32 %v85, %v196
    %198 = vmatpush.msra.mxu0 %v197
    %v199 = vand.u32 %v82, 4294901760
    %v200 = vsub.f32 %v82, %v199
    %201 = vmatpush.msra.mxu0 %v200
    %v202 = vand.u32 %v79, 4294901760
    %v203 = vsub.f32 %v79, %v202
    %204 = vmatpush.msra.mxu0 %v203
    %v205 = vand.u32 %v76, 4294901760
    %v206 = vsub.f32 %v76, %v205
    %207 = vmatpush.msra.mxu0 %v206
    %v208 = vand.u32 %v96, 4294901760
    %v209 = vsub.f32 %v96, %v208
    %210 = vmatmul.f32.gmra.mxu0 %v209
    %v211 = vpop.f32.mrf.mxu0
    %v212 = vadd.f32 %v178, %v211
    %213 = vdwg.mxu0
    %214 = vmatpush.msra.mxu0 0.0
    %215 = vmatpush.msra.mxu0 0.0
    %216 = vmatpush.msra.mxu0 0.0
    %217 = vmatpush.msra.mxu0 0.0
    %218 = vmatpush.msra.mxu0 0.0
    %219 = vmatpush.msra.mxu0 0.0
    %220 = vmatpush.msra.mxu0 0.0
    %221 = vmatpush.msra.mxu0 0.0
    %222 = vmatpush.msra.mxu0 0.0
    %223 = vmatpush.msra.mxu0 0.0
    %v224 = vand.u32 %v91, 4294901760
    %225 = vmatpush.msra.mxu0 %v224
    %v226 = vand.u32 %v88, 4294901760
    %227 = vmatpush.msra.mxu0 %v226
    %v228 = vand.u32 %v85, 4294901760
    %229 = vmatpush.msra.mxu0 %v228
    %v230 = vand.u32 %v82, 4294901760
    %231 = vmatpush.msra.mxu0 %v230
    %v232 = vand.u32 %v79, 4294901760
    %233 = vmatpush.msra.mxu0 %v232
    %v234 = vand.u32 %v76, 4294901760
    %235 = vmatpush.msra.mxu0 %v234
    %v236 = vand.u32 %v96, 4294901760
    %v237 = vsub.f32 %v96, %v236
    %v238 = vand.u32 %v237, 4294901760
    %239 = vmatmul.f32.gmra.mxu0 %v238
    %v240 = vpop.f32.mrf.mxu0
    %v241 = vadd.f32 %v212, %v240
    %242 = vdwg.mxu0
    %243 = vmatpush.msra.mxu0 0.0
    %244 = vmatpush.msra.mxu0 0.0
    %245 = vmatpush.msra.mxu0 0.0
    %246 = vmatpush.msra.mxu0 0.0
    %247 = vmatpush.msra.mxu0 0.0
    %248 = vmatpush.msra.mxu0 0.0
    %249 = vmatpush.msra.mxu0 0.0
    %250 = vmatpush.msra.mxu0 0.0
    %251 = vmatpush.msra.mxu0 0.0
    %252 = vmatpush.msra.mxu0 0.0
    %v253 = vand.u32 %v91, 4294901760
    %v254 = vsub.f32 %v91, %v253
    %v255 = vand.u32 %v254, 4294901760
    %256 = vmatpush.msra.mxu0 %v255
    %v257 = vand.u32 %v88, 4294901760
    %v258 = vsub.f32 %v88, %v257
    %v259 = vand.u32 %v258, 4294901760
    %260 = vmatpush.msra.mxu0 %v259
    %v261 = vand.u32 %v85, 4294901760
    %v262 = vsub.f32 %v85, %v261
    %v263 = vand.u32 %v262, 4294901760
    %264 = vmatpush.msra.mxu0 %v263
    %v265 = vand.u32 %v82, 4294901760
    %v266 = vsub.f32 %v82, %v265
    %v267 = vand.u32 %v266, 4294901760
    %268 = vmatpush.msra.mxu0 %v267
    %v269 = vand.u32 %v79, 4294901760
    %v270 = vsub.f32 %v79, %v269
    %v271 = vand.u32 %v270, 4294901760
    %272 = vmatpush.msra.mxu0 %v271
    %v273 = vand.u32 %v76, 4294901760
    %v274 = vsub.f32 %v76, %v273
    %v275 = vand.u32 %v274, 4294901760
    %276 = vmatpush.msra.mxu0 %v275
    %v277 = vand.u32 %v96, 4294901760
    %278 = vmatmul.f32.gmra.mxu0 %v277
    %v279 = vpop.f32.mrf.mxu0
    %v280 = vadd.f32 %v241, %v279
    %281 = vdwg.mxu0
    %282 = vmatpush.msra.mxu0 0.0
    %283 = vmatpush.msra.mxu0 0.0
    %284 = vmatpush.msra.mxu0 0.0
    %285 = vmatpush.msra.mxu0 0.0
    %286 = vmatpush.msra.mxu0 0.0
    %287 = vmatpush.msra.mxu0 0.0
    %288 = vmatpush.msra.mxu0 0.0
    %289 = vmatpush.msra.mxu0 0.0
    %290 = vmatpush.msra.mxu0 0.0
    %291 = vmatpush.msra.mxu0 0.0
    %v292 = vand.u32 %v91, 4294901760
    %293 = vmatpush.msra.mxu0 %v292
    %v294 = vand.u32 %v88, 4294901760
    %295 = vmatpush.msra.mxu0 %v294
    %v296 = vand.u32 %v85, 4294901760
    %297 = vmatpush.msra.mxu0 %v296
    %v298 = vand.u32 %v82, 4294901760
    %299 = vmatpush.msra.mxu0 %v298
    %v300 = vand.u32 %v79, 4294901760
    %301 = vmatpush.msra.mxu0 %v300
    %v302 = vand.u32 %v76, 4294901760
    %303 = vmatpush.msra.mxu0 %v302
    %v304 = vand.u32 %v96, 4294901760
    %305 = vmatmul.f32.gmra.mxu0 %v304
    %v306 = vpop.f32.mrf.mxu0
    %v307 = vadd.f32 %v280, %v306
    %308 = vdwg.mxu0
    %309 = vmatpush.msra.mxu0 0.0
    %310 = vmatpush.msra.mxu0 0.0
    %311 = vmatpush.msra.mxu0 0.0
    %312 = vmatpush.msra.mxu0 0.0
    %313 = vmatpush.msra.mxu0 0.0
    %314 = vmatpush.msra.mxu0 0.0
    %315 = vmatpush.msra.mxu0 0.0
    %316 = vmatpush.msra.mxu0 0.0
    %317 = vmatpush.msra.mxu0 0.0
    %318 = vmatpush.msra.mxu0 0.0
    %v319 = vand.u32 %v92, 4294901760
    %320 = vmatpush.msra.mxu0 %v319
    %v321 = vand.u32 %v89, 4294901760
    %322 = vmatpush.msra.mxu0 %v321
    %v323 = vand.u32 %v86, 4294901760
    %324 = vmatpush.msra.mxu0 %v323
    %v325 = vand.u32 %v83, 4294901760
    %326 = vmatpush.msra.mxu0 %v325
    %v327 = vand.u32 %v80, 4294901760
    %328 = vmatpush.msra.mxu0 %v327
    %v329 = vand.u32 %v77, 4294901760
    %330 = vmatpush.msra.mxu0 %v329
    %v331 = vand.u32 %v96, 4294901760
    %v332 = vsub.f32 %v96, %v331
    %v333 = vand.u32 %v332, 4294901760
    %v334 = vsub.f32 %v332, %v333
    %v335 = vand.u32 %v334, 4294901760
    %336 = vmatmul.f32.gmra.mxu0 %v335
    %v337 = vpop.f32.mrf.mxu0
    %v338 = vadd.f32 0.0, %v337
    %339 = vdwg.mxu0
    %340 = vmatpush.msra.mxu0 0.0
    %341 = vmatpush.msra.mxu0 0.0
    %342 = vmatpush.msra.mxu0 0.0
    %343 = vmatpush.msra.mxu0 0.0
    %344 = vmatpush.msra.mxu0 0.0
    %345 = vmatpush.msra.mxu0 0.0
    %346 = vmatpush.msra.mxu0 0.0
    %347 = vmatpush.msra.mxu0 0.0
    %348 = vmatpush.msra.mxu0 0.0
    %349 = vmatpush.msra.mxu0 0.0
    %v350 = vand.u32 %v92, 4294901760
    %v351 = vsub.f32 %v92, %v350
    %v352 = vand.u32 %v351, 4294901760
    %v353 = vsub.f32 %v351, %v352
    %v354 = vand.u32 %v353, 4294901760
    %355 = vmatpush.msra.mxu0 %v354
    %v356 = vand.u32 %v89, 4294901760
    %v357 = vsub.f32 %v89, %v356
    %v358 = vand.u32 %v357, 4294901760
    %v359 = vsub.f32 %v357, %v358
    %v360 = vand.u32 %v359, 4294901760
    %361 = vmatpush.msra.mxu0 %v360
    %v362 = vand.u32 %v86, 4294901760
    %v363 = vsub.f32 %v86, %v362
    %v364 = vand.u32 %v363, 4294901760
    %v365 = vsub.f32 %v363, %v364
    %v366 = vand.u32 %v365, 4294901760
    %367 = vmatpush.msra.mxu0 %v366
    %v368 = vand.u32 %v83, 4294901760
    %v369 = vsub.f32 %v83, %v368
    %v370 = vand.u32 %v369, 4294901760
    %v371 = vsub.f32 %v369, %v370
    %v372 = vand.u32 %v371, 4294901760
    %373 = vmatpush.msra.mxu0 %v372
    %v374 = vand.u32 %v80, 4294901760
    %v375 = vsub.f32 %v80, %v374
    %v376 = vand.u32 %v375, 4294901760
    %v377 = vsub.f32 %v375, %v376
    %v378 = vand.u32 %v377, 4294901760
    %379 = vmatpush.msra.mxu0 %v378
    %v380 = vand.u32 %v77, 4294901760
    %v381 = vsub.f32 %v77, %v380
    %v382 = vand.u32 %v381, 4294901760
    %v383 = vsub.f32 %v381, %v382
    %v384 = vand.u32 %v383, 4294901760
    %385 = vmatpush.msra.mxu0 %v384
    %v386 = vand.u32 %v96, 4294901760
    %387 = vmatmul.f32.gmra.mxu0 %v386
    %v388 = vpop.f32.mrf.mxu0
    %v389 = vadd.f32 %v338, %v388
    %390 = vdwg.mxu0
    %391 = vmatpush.msra.mxu0 0.0
    %392 = vmatpush.msra.mxu0 0.0
    %393 = vmatpush.msra.mxu0 0.0
    %394 = vmatpush.msra.mxu0 0.0
    %395 = vmatpush.msra.mxu0 0.0
    %396 = vmatpush.msra.mxu0 0.0
    %397 = vmatpush.msra.mxu0 0.0
    %398 = vmatpush.msra.mxu0 0.0
    %399 = vmatpush.msra.mxu0 0.0
    %400 = vmatpush.msra.mxu0 0.0
    %v401 = vand.u32 %v92, 4294901760
    %v402 = vsub.f32 %v92, %v401
    %403 = vmatpush.msra.mxu0 %v402
    %v404 = vand.u32 %v89, 4294901760
    %v405 = vsub.f32 %v89, %v404
    %406 = vmatpush.msra.mxu0 %v405
    %v407 = vand.u32 %v86, 4294901760
    %v408 = vsub.f32 %v86, %v407
    %409 = vmatpush.msra.mxu0 %v408
    %v410 = vand.u32 %v83, 4294901760
    %v411 = vsub.f32 %v83, %v410
    %412 = vmatpush.msra.mxu0 %v411
    %v413 = vand.u32 %v80, 4294901760
    %v414 = vsub.f32 %v80, %v413
    %415 = vmatpush.msra.mxu0 %v414
    %v416 = vand.u32 %v77, 4294901760
    %v417 = vsub.f32 %v77, %v416
    %418 = vmatpush.msra.mxu0 %v417
    %v419 = vand.u32 %v96, 4294901760
    %v420 = vsub.f32 %v96, %v419
    %421 = vmatmul.f32.gmra.mxu0 %v420
    %v422 = vpop.f32.mrf.mxu0
    %v423 = vadd.f32 %v389, %v422
    %424 = vdwg.mxu0
    %425 = vmatpush.msra.mxu0 0.0
    %426 = vmatpush.msra.mxu0 0.0
    %427 = vmatpush.msra.mxu0 0.0
    %428 = vmatpush.msra.mxu0 0.0
    %429 = vmatpush.msra.mxu0 0.0
    %430 = vmatpush.msra.mxu0 0.0
    %431 = vmatpush.msra.mxu0 0.0
    %432 = vmatpush.msra.mxu0 0.0
    %433 = vmatpush.msra.mxu0 0.0
    %434 = vmatpush.msra.mxu0 0.0
    %v435 = vand.u32 %v92, 4294901760
    %436 = vmatpush.msra.mxu0 %v435
    %v437 = vand.u32 %v89, 4294901760
    %438 = vmatpush.msra.mxu0 %v437
    %v439 = vand.u32 %v86, 4294901760
    %440 = vmatpush.msra.mxu0 %v439
    %v441 = vand.u32 %v83, 4294901760
    %442 = vmatpush.msra.mxu0 %v441
    %v443 = vand.u32 %v80, 4294901760
    %444 = vmatpush.msra.mxu0 %v443
    %v445 = vand.u32 %v77, 4294901760
    %446 = vmatpush.msra.mxu0 %v445
    %v447 = vand.u32 %v96, 4294901760
    %v448 = vsub.f32 %v96, %v447
    %v449 = vand.u32 %v448, 4294901760
    %450 = vmatmul.f32.gmra.mxu0 %v449
    %v451 = vpop.f32.mrf.mxu0
    %v452 = vadd.f32 %v423, %v451
    %453 = vdwg.mxu0
    %454 = vmatpush.msra.mxu0 0.0
    %455 = vmatpush.msra.mxu0 0.0
    %456 = vmatpush.msra.mxu0 0.0
    %457 = vmatpush.msra.mxu0 0.0
    %458 = vmatpush.msra.mxu0 0.0
    %459 = vmatpush.msra.mxu0 0.0
    %460 = vmatpush.msra.mxu0 0.0
    %461 = vmatpush.msra.mxu0 0.0
    %462 = vmatpush.msra.mxu0 0.0
    %463 = vmatpush.msra.mxu0 0.0
    %v464 = vand.u32 %v92, 4294901760
    %v465 = vsub.f32 %v92, %v464
    %v466 = vand.u32 %v465, 4294901760
    %467 = vmatpush.msra.mxu0 %v466
    %v468 = vand.u32 %v89, 4294901760
    %v469 = vsub.f32 %v89, %v468
    %v470 = vand.u32 %v469, 4294901760
    %471 = vmatpush.msra.mxu0 %v470
    %v472 = vand.u32 %v86, 4294901760
    %v473 = vsub.f32 %v86, %v472
    %v474 = vand.u32 %v473, 4294901760
    %475 = vmatpush.msra.mxu0 %v474
    %v476 = vand.u32 %v83, 4294901760
    %v477 = vsub.f32 %v83, %v476
    %v478 = vand.u32 %v477, 4294901760
    %479 = vmatpush.msra.mxu0 %v478
    %v480 = vand.u32 %v80, 4294901760
    %v481 = vsub.f32 %v80, %v480
    %v482 = vand.u32 %v481, 4294901760
    %483 = vmatpush.msra.mxu0 %v482
    %v484 = vand.u32 %v77, 4294901760
    %v485 = vsub.f32 %v77, %v484
    %v486 = vand.u32 %v485, 4294901760
    %487 = vmatpush.msra.mxu0 %v486
    %v488 = vand.u32 %v96, 4294901760
    %489 = vmatmul.f32.gmra.mxu0 %v488
    %v490 = vpop.f32.mrf.mxu0
    %v491 = vadd.f32 %v452, %v490
    %492 = vdwg.mxu0
    %493 = vmatpush.msra.mxu0 0.0
    %494 = vmatpush.msra.mxu0 0.0
    %495 = vmatpush.msra.mxu0 0.0
    %496 = vmatpush.msra.mxu0 0.0
    %497 = vmatpush.msra.mxu0 0.0
    %498 = vmatpush.msra.mxu0 0.0
    %499 = vmatpush.msra.mxu0 0.0
    %500 = vmatpush.msra.mxu0 0.0
    %501 = vmatpush.msra.mxu0 0.0
    %502 = vmatpush.msra.mxu0 0.0
    %v503 = vand.u32 %v92, 4294901760
    %504 = vmatpush.msra.mxu0 %v503
    %v505 = vand.u32 %v89, 4294901760
    %506 = vmatpush.msra.mxu0 %v505
    %v507 = vand.u32 %v86, 4294901760
    %508 = vmatpush.msra.mxu0 %v507
    %v509 = vand.u32 %v83, 4294901760
    %510 = vmatpush.msra.mxu0 %v509
    %v511 = vand.u32 %v80, 4294901760
    %512 = vmatpush.msra.mxu0 %v511
    %v513 = vand.u32 %v77, 4294901760
    %514 = vmatpush.msra.mxu0 %v513
    %v515 = vand.u32 %v96, 4294901760
    %516 = vmatmul.f32.gmra.mxu0 %v515
    %v517 = vpop.f32.mrf.mxu0
    %v518 = vadd.f32 %v491, %v517
    %519 = vdwg.mxu0
    %520 = vmatpush.msra.mxu0 0.0
    %521 = vmatpush.msra.mxu0 0.0
    %522 = vmatpush.msra.mxu0 0.0
    %523 = vmatpush.msra.mxu0 0.0
    %524 = vmatpush.msra.mxu0 0.0
    %525 = vmatpush.msra.mxu0 0.0
    %526 = vmatpush.msra.mxu0 0.0
    %527 = vmatpush.msra.mxu0 0.0
    %528 = vmatpush.msra.mxu0 0.0
    %529 = vmatpush.msra.mxu0 0.0
    %v530 = vand.u32 %v93, 4294901760
    %531 = vmatpush.msra.mxu0 %v530
    %v532 = vand.u32 %v90, 4294901760
    %533 = vmatpush.msra.mxu0 %v532
    %v534 = vand.u32 %v87, 4294901760
    %535 = vmatpush.msra.mxu0 %v534
    %v536 = vand.u32 %v84, 4294901760
    %537 = vmatpush.msra.mxu0 %v536
    %v538 = vand.u32 %v81, 4294901760
    %539 = vmatpush.msra.mxu0 %v538
    %v540 = vand.u32 %v78, 4294901760
    %541 = vmatpush.msra.mxu0 %v540
    %v542 = vand.u32 %v96, 4294901760
    %v543 = vsub.f32 %v96, %v542
    %v544 = vand.u32 %v543, 4294901760
    %v545 = vsub.f32 %v543, %v544
    %v546 = vand.u32 %v545, 4294901760
    %547 = vmatmul.f32.gmra.mxu0 %v546
    %v548 = vpop.f32.mrf.mxu0
    %v549 = vadd.f32 0.0, %v548
    %550 = vdwg.mxu0
    %551 = vmatpush.msra.mxu0 0.0
    %552 = vmatpush.msra.mxu0 0.0
    %553 = vmatpush.msra.mxu0 0.0
    %554 = vmatpush.msra.mxu0 0.0
    %555 = vmatpush.msra.mxu0 0.0
    %556 = vmatpush.msra.mxu0 0.0
    %557 = vmatpush.msra.mxu0 0.0
    %558 = vmatpush.msra.mxu0 0.0
    %559 = vmatpush.msra.mxu0 0.0
    %560 = vmatpush.msra.mxu0 0.0
    %v561 = vand.u32 %v93, 4294901760
    %v562 = vsub.f32 %v93, %v561
    %v563 = vand.u32 %v562, 4294901760
    %v564 = vsub.f32 %v562, %v563
    %v565 = vand.u32 %v564, 4294901760
    %566 = vmatpush.msra.mxu0 %v565
    %v567 = vand.u32 %v90, 4294901760
    %v568 = vsub.f32 %v90, %v567
    %v569 = vand.u32 %v568, 4294901760
    %v570 = vsub.f32 %v568, %v569
    %v571 = vand.u32 %v570, 4294901760
    %572 = vmatpush.msra.mxu0 %v571
    %v573 = vand.u32 %v87, 4294901760
    %v574 = vsub.f32 %v87, %v573
    %v575 = vand.u32 %v574, 4294901760
    %v576 = vsub.f32 %v574, %v575
    %v577 = vand.u32 %v576, 4294901760
    %578 = vmatpush.msra.mxu0 %v577
    %v579 = vand.u32 %v84, 4294901760
    %v580 = vsub.f32 %v84, %v579
    %v581 = vand.u32 %v580, 4294901760
    %v582 = vsub.f32 %v580, %v581
    %v583 = vand.u32 %v582, 4294901760
    %584 = vmatpush.msra.mxu0 %v583
    %v585 = vand.u32 %v81, 4294901760
    %v586 = vsub.f32 %v81, %v585
    %v587 = vand.u32 %v586, 4294901760
    %v588 = vsub.f32 %v586, %v587
    %v589 = vand.u32 %v588, 4294901760
    %590 = vmatpush.msra.mxu0 %v589
    %v591 = vand.u32 %v78, 4294901760
    %v592 = vsub.f32 %v78, %v591
    %v593 = vand.u32 %v592, 4294901760
    %v594 = vsub.f32 %v592, %v593
    %v595 = vand.u32 %v594, 4294901760
    %596 = vmatpush.msra.mxu0 %v595
    %v597 = vand.u32 %v96, 4294901760
    %598 = vmatmul.f32.gmra.mxu0 %v597
    %v599 = vpop.f32.mrf.mxu0
    %v600 = vadd.f32 %v549, %v599
    %601 = vdwg.mxu0
    %602 = vmatpush.msra.mxu0 0.0
    %603 = vmatpush.msra.mxu0 0.0
    %604 = vmatpush.msra.mxu0 0.0
    %605 = vmatpush.msra.mxu0 0.0
    %606 = vmatpush.msra.mxu0 0.0
    %607 = vmatpush.msra.mxu0 0.0
    %608 = vmatpush.msra.mxu0 0.0
    %609 = vmatpush.msra.mxu0 0.0
    %610 = vmatpush.msra.mxu0 0.0
    %611 = vmatpush.msra.mxu0 0.0
    %v612 = vand.u32 %v93, 4294901760
    %v613 = vsub.f32 %v93, %v612
    %614 = vmatpush.msra.mxu0 %v613
    %v615 = vand.u32 %v90, 4294901760
    %v616 = vsub.f32 %v90, %v615
    %617 = vmatpush.msra.mxu0 %v616
    %v618 = vand.u32 %v87, 4294901760
    %v619 = vsub.f32 %v87, %v618
    %620 = vmatpush.msra.mxu0 %v619
    %v621 = vand.u32 %v84, 4294901760
    %v622 = vsub.f32 %v84, %v621
    %623 = vmatpush.msra.mxu0 %v622
    %v624 = vand.u32 %v81, 4294901760
    %v625 = vsub.f32 %v81, %v624
    %626 = vmatpush.msra.mxu0 %v625
    %v627 = vand.u32 %v78, 4294901760
    %v628 = vsub.f32 %v78, %v627
    %629 = vmatpush.msra.mxu0 %v628
    %v630 = vand.u32 %v96, 4294901760
    %v631 = vsub.f32 %v96, %v630
    %632 = vmatmul.f32.gmra.mxu0 %v631
    %v633 = vpop.f32.mrf.mxu0
    %v634 = vadd.f32 %v600, %v633
    %635 = vdwg.mxu0
    %636 = vmatpush.msra.mxu0 0.0
    %637 = vmatpush.msra.mxu0 0.0
    %638 = vmatpush.msra.mxu0 0.0
    %639 = vmatpush.msra.mxu0 0.0
    %640 = vmatpush.msra.mxu0 0.0
    %641 = vmatpush.msra.mxu0 0.0
    %642 = vmatpush.msra.mxu0 0.0
    %643 = vmatpush.msra.mxu0 0.0
    %644 = vmatpush.msra.mxu0 0.0
    %645 = vmatpush.msra.mxu0 0.0
    %v646 = vand.u32 %v93, 4294901760
    %647 = vmatpush.msra.mxu0 %v646
    %v648 = vand.u32 %v90, 4294901760
    %649 = vmatpush.msra.mxu0 %v648
    %v650 = vand.u32 %v87, 4294901760
    %651 = vmatpush.msra.mxu0 %v650
    %v652 = vand.u32 %v84, 4294901760
    %653 = vmatpush.msra.mxu0 %v652
    %v654 = vand.u32 %v81, 4294901760
    %655 = vmatpush.msra.mxu0 %v654
    %v656 = vand.u32 %v78, 4294901760
    %657 = vmatpush.msra.mxu0 %v656
    %v658 = vand.u32 %v96, 4294901760
    %v659 = vsub.f32 %v96, %v658
    %v660 = vand.u32 %v659, 4294901760
    %661 = vmatmul.f32.gmra.mxu0 %v660
    %v662 = vpop.f32.mrf.mxu0
    %v663 = vadd.f32 %v634, %v662
    %664 = vdwg.mxu0
    %665 = vmatpush.msra.mxu0 0.0
    %666 = vmatpush.msra.mxu0 0.0
    %667 = vmatpush.msra.mxu0 0.0
    %668 = vmatpush.msra.mxu0 0.0
    %669 = vmatpush.msra.mxu0 0.0
    %670 = vmatpush.msra.mxu0 0.0
    %671 = vmatpush.msra.mxu0 0.0
    %672 = vmatpush.msra.mxu0 0.0
    %673 = vmatpush.msra.mxu0 0.0
    %674 = vmatpush.msra.mxu0 0.0
    %v675 = vand.u32 %v93, 4294901760
    %v676 = vsub.f32 %v93, %v675
    %v677 = vand.u32 %v676, 4294901760
    %678 = vmatpush.msra.mxu0 %v677
    %v679 = vand.u32 %v90, 4294901760
    %v680 = vsub.f32 %v90, %v679
    %v681 = vand.u32 %v680, 4294901760
    %682 = vmatpush.msra.mxu0 %v681
    %v683 = vand.u32 %v87, 4294901760
    %v684 = vsub.f32 %v87, %v683
    %v685 = vand.u32 %v684, 4294901760
    %686 = vmatpush.msra.mxu0 %v685
    %v687 = vand.u32 %v84, 4294901760
    %v688 = vsub.f32 %v84, %v687
    %v689 = vand.u32 %v688, 4294901760
    %690 = vmatpush.msra.mxu0 %v689
    %v691 = vand.u32 %v81, 4294901760
    %v692 = vsub.f32 %v81, %v691
    %v693 = vand.u32 %v692, 4294901760
    %694 = vmatpush.msra.mxu0 %v693
    %v695 = vand.u32 %v78, 4294901760
    %v696 = vsub.f32 %v78, %v695
    %v697 = vand.u32 %v696, 4294901760
    %698 = vmatpush.msra.mxu0 %v697
    %v699 = vand.u32 %v96, 4294901760
    %700 = vmatmul.f32.gmra.mxu0 %v699
    %v701 = vpop.f32.mrf.mxu0
    %v702 = vadd.f32 %v663, %v701
    %703 = vdwg.mxu0
    %704 = vmatpush.msra.mxu0 0.0
    %705 = vmatpush.msra.mxu0 0.0
    %706 = vmatpush.msra.mxu0 0.0
    %707 = vmatpush.msra.mxu0 0.0
    %708 = vmatpush.msra.mxu0 0.0
    %709 = vmatpush.msra.mxu0 0.0
    %710 = vmatpush.msra.mxu0 0.0
    %711 = vmatpush.msra.mxu0 0.0
    %712 = vmatpush.msra.mxu0 0.0
    %713 = vmatpush.msra.mxu0 0.0
    %v714 = vand.u32 %v93, 4294901760
    %715 = vmatpush.msra.mxu0 %v714
    %v716 = vand.u32 %v90, 4294901760
    %717 = vmatpush.msra.mxu0 %v716
    %v718 = vand.u32 %v87, 4294901760
    %719 = vmatpush.msra.mxu0 %v718
    %v720 = vand.u32 %v84, 4294901760
    %721 = vmatpush.msra.mxu0 %v720
    %v722 = vand.u32 %v81, 4294901760
    %723 = vmatpush.msra.mxu0 %v722
    %v724 = vand.u32 %v78, 4294901760
    %725 = vmatpush.msra.mxu0 %v724
    %v726 = vand.u32 %v96, 4294901760
    %727 = vmatmul.f32.gmra.mxu0 %v726
    %v728 = vpop.f32.mrf.mxu0
    %v729 = vadd.f32 %v702, %v728
    %730 = vdwg.mxu0
    %v731 = vld [vmem:[#allocation5] sm:$0x7]
    %v733 = vperm.slane %v731, 0
    %v734 = vperm.slane %v731, 1
    %v735 = vperm.slane %v731, 2
    %v739 = vmul.f32 %v307, %v733
    %v740 = vmul.f32 %v518, %v734
    %v741 = vmul.f32 %v729, %v735
    %v742 = vld [vmem:[#allocation7] sm:$0x7]
    %v744 = vperm.slane %v742, 0
    %v745 = vperm.slane %v742, 1
    %v746 = vperm.slane %v742, 2
    %v750 = vadd.f32 %v739, %v744
    %v751 = vadd.f32 %v740, %v745
    %v752 = vadd.f32 %v741, %v746
    %v753 = vand.u32 2147483647, %v750
    %vm754 = vcmp.le.f32.partialorder %v753, 0.7853982
    %vm755 = vcmp.lt.s32.totalorder %v750, 0
    %v756 = vand.u32 %v750, 2139095040
    %v757 = vshrl.u32 %v756, 23
    %v758 = vsub.s32 %v757, 127
    %v759 = vand.u32 2147483647, %v750
    %v760 = vand.u32 %v759, 8388607
    %v761 = vor.u32 %v760, 8388608
    %v762 = vsub.s32 0, %v761
    %v763 = vadd.s32 %v758, 1
    %vm764 = vcmp.gt.s32.totalorder %v763, 0
    %v765 = vsel %vm764, %v763, 0
    %v766 = vshrl.u32 %v765, 5
    %v767 = vand.u32 %v765, 31
    %v768 = vsub.s32 32, %v767
    %v769 = vshrl.u32 683565275, %v768
    %v770 = vshll.u32 683565275, %v767
    %v771 = vshrl.u32 2475754826, %v768
    %v772 = vor.u32 %v770, %v771
    %v773 = vshll.u32 2475754826, %v767
    %v774 = vshrl.u32 2131351028, %v768
    %v775 = vor.u32 %v773, %v774
    %v776 = vshll.u32 2131351028, %v767
    %v777 = vshrl.u32 2102212464, %v768
    %v778 = vor.u32 %v776, %v777
    %v779 = vshll.u32 2102212464, %v767
    %v780 = vshrl.u32 920167782, %v768
    %v781 = vor.u32 %v779, %v780
    %v782 = vshll.u32 920167782, %v767
    %v783 = vshrl.u32 1326507024, %v768
    %v784 = vor.u32 %v782, %v783
    %vm785 = vcmp.lt.s32.totalorder %v766, 1
    %vm786 = vcmp.lt.s32.totalorder %v766, 2
    %vm787 = vcmp.lt.s32.totalorder %v766, 3
    %vm788 = vcmp.lt.s32.totalorder %v766, 4
    %v789 = vsel %vm785, %v769, %v772
    %v790 = vsel %vm788, %v778, 2102212464
    %v791 = vsel %vm787, %v775, %v790
    %v792 = vsel %vm786, %v789, %v791
    %v793 = vsel %vm785, %v772, %v775
    %v794 = vsel %vm788, %v781, 920167782
    %v795 = vsel %vm787, %v778, %v794
    %v796 = vsel %vm786, %v793, %v795
    %v797 = vsel %vm785, %v775, %v778
    %v798 = vsel %vm788, %v784, 1326507024
    %v799 = vsel %vm787, %v781, %v798
    %v800 = vsel %vm786, %v797, %v799
    %v801 = vshll.u32 %v761, 8
    %v802 = vand.u32 %v801, 65535
    %v803 = vshrl.u32 %v801, 16
    %v804 = vand.u32 %v800, 65535
    %v805 = vshrl.u32 %v800, 16
    %v806 = vmul.u32 %v802, %v804
    %v807 = vmul.u32 %v802, %v805
    %v808 = vmul.u32 %v803, %v804
    %v809 = vmul.u32 %v803, %v805
    %v810 = vshll.u32 %v807, 16
    %v811 = vshrl.u32 %v807, 16
    %v812 = vshll.u32 %v808, 16
    %v813 = vshrl.u32 %v808, 16
    %vm814 = vc.u32 %v806, %v810
    %v815 = vsel %vm814, 1, 0
    %v816 = vadd.s32 %v806, %v810
    %v817 = vadd.s32 %v809, %v815
    %vm818 = vc.u32 %v816, %v812
    %v819 = vsel %vm818, 1, 0
    %v820 = vadd.s32 %v816, %v812
    %v821 = vadd.s32 %v817, %v819
    %v822 = vadd.s32 %v821, %v811
    %v823 = vadd.s32 %v822, %v813
    %v824 = vand.u32 %v801, 65535
    %v825 = vshrl.u32 %v801, 16
    %v826 = vand.u32 %v796, 65535
    %v827 = vshrl.u32 %v796, 16
    %v828 = vmul.u32 %v824, %v826
    %v829 = vmul.u32 %v824, %v827
    %v830 = vmul.u32 %v825, %v826
    %v831 = vmul.u32 %v825, %v827
    %v832 = vshll.u32 %v829, 16
    %v833 = vshrl.u32 %v829, 16
    %v834 = vshll.u32 %v830, 16
    %v835 = vshrl.u32 %v830, 16
    %vm836 = vc.u32 %v828, %v832
    %v837 = vsel %vm836, 1, 0
    %v838 = vadd.s32 %v828, %v832
    %v839 = vadd.s32 %v831, %v837
    %vm840 = vc.u32 %v838, %v834
    %v841 = vsel %vm840, 1, 0
    %v842 = vadd.s32 %v838, %v834
    %v843 = vadd.s32 %v839, %v841
    %v844 = vadd.s32 %v843, %v833
    %v845 = vadd.s32 %v844, %v835
    %v846 = vmul.u32 %v801, %v792
    %v847 = vadd.s32 %v823, %v842
    %vm848 = vc.u32 %v823, %v842
    %v849 = vadd.s32 %v845, 1
    %v850 = vsel %vm848, %v849, %v845
    %v851 = vadd.s32 %v846, %v850
    %v852 = vadd.s32 %v851, 536870912
    %v853 = vshrl.u32 %v852, 30
    %v854 = vshll.u32 %v853, 30
    %v855 = vsub.s32 %v851, %v854
    %vm856 = vcmp.lt.s32.totalorder %v855, 0
    %v857 = vsub.s32 0, %v855
    %v858 = vsel %vm856, %v857, %v855
    %v859 = vclz %v858
    %v860 = vsub.s32 %v859, 2
    %vm861 = vcmp.gt.s32.totalorder 0, %v860
    %v862 = vsel %vm861, 0, %v860
    %v863 = vsub.s32 32, %v862
    %v864 = vshll.u32 %v855, %v862
    %v865 = vshrl.u32 %v847, %v863
    %v866 = vor.u32 %v864, %v865
    %v867 = vsub.s32 4294967266, %v862
    %v868 = vadd.s32 %v867, 127
    %v869 = vshll.u32 %v868, 23
    %v870 = vor.u32 4788187, %v869
    %v871 = vand.u32 2147483647, %v870
    %v873 = vcvt.s32.f32 %v866
    %v874 = vmul.f32 %v873, %v871
    %v875 = vxor.u32 %v874, 2147483648
    %v876 = vsel %vm755, %v875, %v874
    %v877 = vsub.s32 4, %v853
    %v878 = vsel %vm755, %v877, %v853
    %v879 = vsel %vm754, %v750, %v876
    %v880 = vsel %vm754, 0, %v878
    %v881 = vmul.f32 %v879, %v879
    %v882 = vmul.f32 %v881, -0.001358992
    %v883 = vadd.f32 %v882, 0.041655596
    %v884 = vmul.f32 %v881, %v883
    %v885 = vadd.f32 %v884, -0.4999988
    %v886 = vmul.f32 %v881, %v885
    %v887 = vadd.f32 1.0, %v886
    %v888 = vmul.f32 %v879, %v879
    %v889 = vmul.f32 %v888, -0.00019511016
    %v890 = vadd.f32 %v889, 0.008332121
    %v891 = vmul.f32 %v888, %v890
    %v892 = vadd.f32 %v891, -0.16666654
    %v893 = vmul.f32 %v888, %v892
    %v894 = vadd.f32 %v893, 1.0
    %v895 = vmul.f32 %v894, %v879
    %vm896 = vweird.f32 %v750
    %v897 = vadd.s32 %v880, 3
    %v898 = vand.u32 %v897, 3
    %vm899 = vcmp.lt.s32.totalorder %v898, 2
    %vm900 = vcmp.eq.s32.totalorder %v898, 0
    %v901 = vxor.u32 %v895, 2147483648
    %v902 = vsel %vm900, %v887, %v901
    %vm903 = vcmp.eq.s32.totalorder %v898, 2
    %v904 = vxor.u32 %v887, 2147483648
    %v905 = vsel %vm903, %v904, %v895
    %v906 = vsel %vm899, %v902, %v905
    %v907 = vsel %vm896, nan, %v906
    %v908 = vand.u32 2147483647, %v751
    %vm909 = vcmp.le.f32.partialorder %v908, 0.7853982
    %vm910 = vcmp.lt.s32.totalorder %v751, 0
    %v911 = vand.u32 %v751, 2139095040
    %v912 = vshrl.u32 %v911, 23
    %v913 = vsub.s32 %v912, 127
    %v914 = vand.u32 2147483647, %v751
    %v915 = vand.u32 %v914, 8388607
    %v916 = vor.u32 %v915, 8388608
    %v917 = vsub.s32 0, %v916
    %v918 = vadd.s32 %v913, 1
    %vm919 = vcmp.gt.s32.totalorder %v918, 0
    %v920 = vsel %vm919, %v918, 0
    %v921 = vshrl.u32 %v920, 5
    %v922 = vand.u32 %v920, 31
    %v923 = vsub.s32 32, %v922
    %v924 = vshrl.u32 683565275, %v923
    %v925 = vshll.u32 683565275, %v922
    %v926 = vshrl.u32 2475754826, %v923
    %v927 = vor.u32 %v925, %v926
    %v928 = vshll.u32 2475754826, %v922
    %v929 = vshrl.u32 2131351028, %v923
    %v930 = vor.u32 %v928, %v929
    %v931 = vshll.u32 2131351028, %v922
    %v932 = vshrl.u32 2102212464, %v923
    %v933 = vor.u32 %v931, %v932
    %v934 = vshll.u32 2102212464, %v922
    %v935 = vshrl.u32 920167782, %v923
    %v936 = vor.u32 %v934, %v935
    %v937 = vshll.u32 920167782, %v922
    %v938 = vshrl.u32 1326507024, %v923
    %v939 = vor.u32 %v937, %v938
    %vm940 = vcmp.lt.s32.totalorder %v921, 1
    %vm941 = vcmp.lt.s32.totalorder %v921, 2
    %vm942 = vcmp.lt.s32.totalorder %v921, 3
    %vm943 = vcmp.lt.s32.totalorder %v921, 4
    %v944 = vsel %vm940, %v924, %v927
    %v945 = vsel %vm943, %v933, 2102212464
    %v946 = vsel %vm942, %v930, %v945
    %v947 = vsel %vm941, %v944, %v946
    %v948 = vsel %vm940, %v927, %v930
    %v949 = vsel %vm943, %v936, 920167782
    %v950 = vsel %vm942, %v933, %v949
    %v951 = vsel %vm941, %v948, %v950
    %v952 = vsel %vm940, %v930, %v933
    %v953 = vsel %vm943, %v939, 1326507024
    %v954 = vsel %vm942, %v936, %v953
    %v955 = vsel %vm941, %v952, %v954
    %v956 = vshll.u32 %v916, 8
    %v957 = vand.u32 %v956, 65535
    %v958 = vshrl.u32 %v956, 16
    %v959 = vand.u32 %v955, 65535
    %v960 = vshrl.u32 %v955, 16
    %v961 = vmul.u32 %v957, %v959
    %v962 = vmul.u32 %v957, %v960
    %v963 = vmul.u32 %v958, %v959
    %v964 = vmul.u32 %v958, %v960
    %v965 = vshll.u32 %v962, 16
    %v966 = vshrl.u32 %v962, 16
    %v967 = vshll.u32 %v963, 16
    %v968 = vshrl.u32 %v963, 16
    %vm969 = vc.u32 %v961, %v965
    %v970 = vsel %vm969, 1, 0
    %v971 = vadd.s32 %v961, %v965
    %v972 = vadd.s32 %v964, %v970
    %vm973 = vc.u32 %v971, %v967
    %v974 = vsel %vm973, 1, 0
    %v975 = vadd.s32 %v971, %v967
    %v976 = vadd.s32 %v972, %v974
    %v977 = vadd.s32 %v976, %v966
    %v978 = vadd.s32 %v977, %v968
    %v979 = vand.u32 %v956, 65535
    %v980 = vshrl.u32 %v956, 16
    %v981 = vand.u32 %v951, 65535
    %v982 = vshrl.u32 %v951, 16
    %v983 = vmul.u32 %v979, %v981
    %v984 = vmul.u32 %v979, %v982
    %v985 = vmul.u32 %v980, %v981
    %v986 = vmul.u32 %v980, %v982
    %v987 = vshll.u32 %v984, 16
    %v988 = vshrl.u32 %v984, 16
    %v989 = vshll.u32 %v985, 16
    %v990 = vshrl.u32 %v985, 16
    %vm991 = vc.u32 %v983, %v987
    %v992 = vsel %vm991, 1, 0
    %v993 = vadd.s32 %v983, %v987
    %v994 = vadd.s32 %v986, %v992
    %vm995 = vc.u32 %v993, %v989
    %v996 = vsel %vm995, 1, 0
    %v997 = vadd.s32 %v993, %v989
    %v998 = vadd.s32 %v994, %v996
    %v999 = vadd.s32 %v998, %v988
    %v1000 = vadd.s32 %v999, %v990
    %v1001 = vmul.u32 %v956, %v947
    %v1002 = vadd.s32 %v978, %v997
    %vm1003 = vc.u32 %v978, %v997
    %v1004 = vadd.s32 %v1000, 1
    %v1005 = vsel %vm1003, %v1004, %v1000
    %v1006 = vadd.s32 %v1001, %v1005
    %v1007 = vadd.s32 %v1006, 536870912
    %v1008 = vshrl.u32 %v1007, 30
    %v1009 = vshll.u32 %v1008, 30
    %v1010 = vsub.s32 %v1006, %v1009
    %vm1011 = vcmp.lt.s32.totalorder %v1010, 0
    %v1012 = vsub.s32 0, %v1010
    %v1013 = vsel %vm1011, %v1012, %v1010
    %v1014 = vclz %v1013
    %v1015 = vsub.s32 %v1014, 2
    %vm1016 = vcmp.gt.s32.totalorder 0, %v1015
    %v1017 = vsel %vm1016, 0, %v1015
    %v1018 = vsub.s32 32, %v1017
    %v1019 = vshll.u32 %v1010, %v1017
    %v1020 = vshrl.u32 %v1002, %v1018
    %v1021 = vor.u32 %v1019, %v1020
    %v1022 = vsub.s32 4294967266, %v1017
    %v1023 = vadd.s32 %v1022, 127
    %v1024 = vshll.u32 %v1023, 23
    %v1025 = vor.u32 4788187, %v1024
    %v1026 = vand.u32 2147483647, %v1025
    %v1028 = vcvt.s32.f32 %v1021
    %v1029 = vmul.f32 %v1028, %v1026
    %v1030 = vxor.u32 %v1029, 2147483648
    %v1031 = vsel %vm910, %v1030, %v1029
    %v1032 = vsub.s32 4, %v1008
    %v1033 = vsel %vm910, %v1032, %v1008
    %v1034 = vsel %vm909, %v751, %v1031
    %v1035 = vsel %vm909, 0, %v1033
    %v1036 = vmul.f32 %v1034, %v1034
    %v1037 = vmul.f32 %v1036, -0.001358992
    %v1038 = vadd.f32 %v1037, 0.041655596
    %v1039 = vmul.f32 %v1036, %v1038
    %v1040 = vadd.f32 %v1039, -0.4999988
    %v1041 = vmul.f32 %v1036, %v1040
    %v1042 = vadd.f32 1.0, %v1041
    %v1043 = vmul.f32 %v1034, %v1034
    %v1044 = vmul.f32 %v1043, -0.00019511016
    %v1045 = vadd.f32 %v1044, 0.008332121
    %v1046 = vmul.f32 %v1043, %v1045
    %v1047 = vadd.f32 %v1046, -0.16666654
    %v1048 = vmul.f32 %v1043, %v1047
    %v1049 = vadd.f32 %v1048, 1.0
    %v1050 = vmul.f32 %v1049, %v1034
    %vm1051 = vweird.f32 %v751
    %v1052 = vadd.s32 %v1035, 3
    %v1053 = vand.u32 %v1052, 3
    %vm1054 = vcmp.lt.s32.totalorder %v1053, 2
    %vm1055 = vcmp.eq.s32.totalorder %v1053, 0
    %v1056 = vxor.u32 %v1050, 2147483648
    %v1057 = vsel %vm1055, %v1042, %v1056
    %vm1058 = vcmp.eq.s32.totalorder %v1053, 2
    %v1059 = vxor.u32 %v1042, 2147483648
    %v1060 = vsel %vm1058, %v1059, %v1050
    %v1061 = vsel %vm1054, %v1057, %v1060
    %v1062 = vsel %vm1051, nan, %v1061
    %v1063 = vand.u32 2147483647, %v752
    %vm1064 = vcmp.le.f32.partialorder %v1063, 0.7853982
    %vm1065 = vcmp.lt.s32.totalorder %v752, 0
    %v1066 = vand.u32 %v752, 2139095040
    %v1067 = vshrl.u32 %v1066, 23
    %v1068 = vsub.s32 %v1067, 127
    %v1069 = vand.u32 2147483647, %v752
    %v1070 = vand.u32 %v1069, 8388607
    %v1071 = vor.u32 %v1070, 8388608
    %v1072 = vsub.s32 0, %v1071
    %v1073 = vadd.s32 %v1068, 1
    %vm1074 = vcmp.gt.s32.totalorder %v1073, 0
    %v1075 = vsel %vm1074, %v1073, 0
    %v1076 = vshrl.u32 %v1075, 5
    %v1077 = vand.u32 %v1075, 31
    %v1078 = vsub.s32 32, %v1077
    %v1079 = vshrl.u32 683565275, %v1078
    %v1080 = vshll.u32 683565275, %v1077
    %v1081 = vshrl.u32 2475754826, %v1078
    %v1082 = vor.u32 %v1080, %v1081
    %v1083 = vshll.u32 2475754826, %v1077
    %v1084 = vshrl.u32 2131351028, %v1078
    %v1085 = vor.u32 %v1083, %v1084
    %v1086 = vshll.u32 2131351028, %v1077
    %v1087 = vshrl.u32 2102212464, %v1078
    %v1088 = vor.u32 %v1086, %v1087
    %v1089 = vshll.u32 2102212464, %v1077
    %v1090 = vshrl.u32 920167782, %v1078
    %v1091 = vor.u32 %v1089, %v1090
    %v1092 = vshll.u32 920167782, %v1077
    %v1093 = vshrl.u32 1326507024, %v1078
    %v1094 = vor.u32 %v1092, %v1093
    %vm1095 = vcmp.lt.s32.totalorder %v1076, 1
    %vm1096 = vcmp.lt.s32.totalorder %v1076, 2
    %vm1097 = vcmp.lt.s32.totalorder %v1076, 3
    %vm1098 = vcmp.lt.s32.totalorder %v1076, 4
    %v1099 = vsel %vm1095, %v1079, %v1082
    %v1100 = vsel %vm1098, %v1088, 2102212464
    %v1101 = vsel %vm1097, %v1085, %v1100
    %v1102 = vsel %vm1096, %v1099, %v1101
    %v1103 = vsel %vm1095, %v1082, %v1085
    %v1104 = vsel %vm1098, %v1091, 920167782
    %v1105 = vsel %vm1097, %v1088, %v1104
    %v1106 = vsel %vm1096, %v1103, %v1105
    %v1107 = vsel %vm1095, %v1085, %v1088
    %v1108 = vsel %vm1098, %v1094, 1326507024
    %v1109 = vsel %vm1097, %v1091, %v1108
    %v1110 = vsel %vm1096, %v1107, %v1109
    %v1111 = vshll.u32 %v1071, 8
    %v1112 = vand.u32 %v1111, 65535
    %v1113 = vshrl.u32 %v1111, 16
    %v1114 = vand.u32 %v1110, 65535
    %v1115 = vshrl.u32 %v1110, 16
    %v1116 = vmul.u32 %v1112, %v1114
    %v1117 = vmul.u32 %v1112, %v1115
    %v1118 = vmul.u32 %v1113, %v1114
    %v1119 = vmul.u32 %v1113, %v1115
    %v1120 = vshll.u32 %v1117, 16
    %v1121 = vshrl.u32 %v1117, 16
    %v1122 = vshll.u32 %v1118, 16
    %v1123 = vshrl.u32 %v1118, 16
    %vm1124 = vc.u32 %v1116, %v1120
    %v1125 = vsel %vm1124, 1, 0
    %v1126 = vadd.s32 %v1116, %v1120
    %v1127 = vadd.s32 %v1119, %v1125
    %vm1128 = vc.u32 %v1126, %v1122
    %v1129 = vsel %vm1128, 1, 0
    %v1130 = vadd.s32 %v1126, %v1122
    %v1131 = vadd.s32 %v1127, %v1129
    %v1132 = vadd.s32 %v1131, %v1121
    %v1133 = vadd.s32 %v1132, %v1123
    %v1134 = vand.u32 %v1111, 65535
    %v1135 = vshrl.u32 %v1111, 16
    %v1136 = vand.u32 %v1106, 65535
    %v1137 = vshrl.u32 %v1106, 16
    %v1138 = vmul.u32 %v1134, %v1136
    %v1139 = vmul.u32 %v1134, %v1137
    %v1140 = vmul.u32 %v1135, %v1136
    %v1141 = vmul.u32 %v1135, %v1137
    %v1142 = vshll.u32 %v1139, 16
    %v1143 = vshrl.u32 %v1139, 16
    %v1144 = vshll.u32 %v1140, 16
    %v1145 = vshrl.u32 %v1140, 16
    %vm1146 = vc.u32 %v1138, %v1142
    %v1147 = vsel %vm1146, 1, 0
    %v1148 = vadd.s32 %v1138, %v1142
    %v1149 = vadd.s32 %v1141, %v1147
    %vm1150 = vc.u32 %v1148, %v1144
    %v1151 = vsel %vm1150, 1, 0
    %v1152 = vadd.s32 %v1148, %v1144
    %v1153 = vadd.s32 %v1149, %v1151
    %v1154 = vadd.s32 %v1153, %v1143
    %v1155 = vadd.s32 %v1154, %v1145
    %v1156 = vmul.u32 %v1111, %v1102
    %v1157 = vadd.s32 %v1133, %v1152
    %vm1158 = vc.u32 %v1133, %v1152
    %v1159 = vadd.s32 %v1155, 1
    %v1160 = vsel %vm1158, %v1159, %v1155
    %v1161 = vadd.s32 %v1156, %v1160
    %v1162 = vadd.s32 %v1161, 536870912
    %v1163 = vshrl.u32 %v1162, 30
    %v1164 = vshll.u32 %v1163, 30
    %v1165 = vsub.s32 %v1161, %v1164
    %vm1166 = vcmp.lt.s32.totalorder %v1165, 0
    %v1167 = vsub.s32 0, %v1165
    %v1168 = vsel %vm1166, %v1167, %v1165
    %v1169 = vclz %v1168
    %v1170 = vsub.s32 %v1169, 2
    %vm1171 = vcmp.gt.s32.totalorder 0, %v1170
    %v1172 = vsel %vm1171, 0, %v1170
    %v1173 = vsub.s32 32, %v1172
    %v1174 = vshll.u32 %v1165, %v1172
    %v1175 = vshrl.u32 %v1157, %v1173
    %v1176 = vor.u32 %v1174, %v1175
    %v1177 = vsub.s32 4294967266, %v1172
    %v1178 = vadd.s32 %v1177, 127
    %v1179 = vshll.u32 %v1178, 23
    %v1180 = vor.u32 4788187, %v1179
    %v1181 = vand.u32 2147483647, %v1180
    %v1183 = vcvt.s32.f32 %v1176
    %v1184 = vmul.f32 %v1183, %v1181
    %v1185 = vxor.u32 %v1184, 2147483648
    %v1186 = vsel %vm1065, %v1185, %v1184
    %v1187 = vsub.s32 4, %v1163
    %v1188 = vsel %vm1065, %v1187, %v1163
    %v1189 = vsel %vm1064, %v752, %v1186
    %v1190 = vsel %vm1064, 0, %v1188
    %v1191 = vmul.f32 %v1189, %v1189
    %v1192 = vmul.f32 %v1191, -0.001358992
    %v1193 = vadd.f32 %v1192, 0.041655596
    %v1194 = vmul.f32 %v1191, %v1193
    %v1195 = vadd.f32 %v1194, -0.4999988
    %v1196 = vmul.f32 %v1191, %v1195
    %v1197 = vadd.f32 1.0, %v1196
    %v1198 = vmul.f32 %v1189, %v1189
    %v1199 = vmul.f32 %v1198, -0.00019511016
    %v1200 = vadd.f32 %v1199, 0.008332121
    %v1201 = vmul.f32 %v1198, %v1200
    %v1202 = vadd.f32 %v1201, -0.16666654
    %v1203 = vmul.f32 %v1198, %v1202
    %v1204 = vadd.f32 %v1203, 1.0
    %v1205 = vmul.f32 %v1204, %v1189
    %vm1206 = vweird.f32 %v752
    %v1207 = vadd.s32 %v1190, 3
    %v1208 = vand.u32 %v1207, 3
    %vm1209 = vcmp.lt.s32.totalorder %v1208, 2
    %vm1210 = vcmp.eq.s32.totalorder %v1208, 0
    %v1211 = vxor.u32 %v1205, 2147483648
    %v1212 = vsel %vm1210, %v1197, %v1211
    %vm1213 = vcmp.eq.s32.totalorder %v1208, 2
    %v1214 = vxor.u32 %v1197, 2147483648
    %v1215 = vsel %vm1213, %v1214, %v1205
    %v1216 = vsel %vm1209, %v1212, %v1215
    %v1217 = vsel %vm1206, nan, %v1216
    %1218 = vst [vmem:[#allocation10] sm:$0xff] %v907
    %1219 = vst [vmem:[#allocation10 + $0x8] sm:$0xff] %v1062
    %1220 = vst [vmem:[#allocation10 + $0x10] sm:$0xff] %v1217
    // Predicated region
    $region34: #{tpu_custom_call.1} parent=1 // pred_check
      _
    $region35: #{tpu_custom_call.1} parent=1 // pred_check_branch
      %1222 = sbr.rel (0) target = $region37
    $region36: #{tpu_custom_call.1} parent=1 // pred_region
      %1224 = vsyncadd [#allocation4], 0
      %s1226 = sshll.u32 [#allocation10], 4
      %s1227 = int_to_ptr.vmem [resolvable:$true] %s1226
      %s1228 = sshll.u32 %s4, 4
      %s1229 = int_to_ptr.hbm [resolvable:$true] %s1228
      %1231 = dma.vmem_to_hbm [thread:$0]  %s1227, 384, %s1229, [#allocation4]
    $region37: #{tpu_custom_call.1} parent=1 // pred_fallthru
      _
    // Predicated region
    $region38: #{tpu_custom_call.1} parent=1 // pred_check
      _
    $region39: #{tpu_custom_call.1} parent=1 // pred_check_branch
      %1233 = sbr.rel (0) target = $region41
    $region40: #{tpu_custom_call.1} parent=1 // pred_region
      %1235 = dma.done [#allocation4], 384
    $region41: #{tpu_custom_call.1} parent=1 // pred_fallthru
      _
    %1236 = vsyncpa [#allocation3], 1
    %1237 = vsyncpa [#allocation6], 1
    %1238 = vsyncpa [#allocation9], 1
    %1239 = vsyncpa [#allocation4], 1

</llo_original>
